<compile_context>
chip_gen: v5e
topology: v5e:2x2
jax: 0.10.0
libtpu: 0.0.40
codegen_flags: <defaults>
</compile_context>

<pallas_src>
import math
import functools

import jax
import jax.numpy as jnp
from jax.experimental import pallas as pl
from jax.experimental.pallas import tpu as pltpu


def _round_up(x, m):
    return ((x + m - 1) // m) * m


def _sinusoidal_kernel(*refs, r):
    # refs = (t_col_0, ..., t_col_{r-1}, freq_table, sin_mask, out)
    #   t_col_k:    (TR, 1)      f32   timesteps for lane-group k
    #   freq_table: (r, W)       f32   row k = freq_full placed in lanes [k*dim,(k+1)*dim)
    #   sin_mask:   (1, W)       f32   1.0 where the lane belongs to the sin half
    #   out:        (TR, W)      out_dtype
    t_cols = refs[:r]
    freq_ref = refs[r]
    mask_ref = refs[r + 1]
    out_ref = refs[r + 2]

    # emb[:, k*dim + j] = t_k * freq_full[j], built as a sum of masked
    # broadcast outer products (exact: off-group terms are exact zeros).
    emb = t_cols[0][...] * freq_ref[0:1, :]
    for k in range(1, r):
        emb = emb + t_cols[k][...] * freq_ref[k : k + 1, :]

    sin_lane = mask_ref[...] != 0.0
    out_ref[...] = jnp.where(sin_lane, jnp.sin(emb), jnp.cos(emb)).astype(out_ref.dtype)


def sinusoidal_pos_emb(t, dim, *, out_dtype=jnp.float32, block_bytes=4 << 20):
    """Pallas equivalent of SinusoidalPosEmb(dim)(t).

    t:   (B,) array of timesteps
    dim: embedding dimension (even, >= 4)
    returns: (B, dim) array [sin | cos] in out_dtype (compute is f32).
    """
    assert dim % 2 == 0, "dim must be even"
    assert dim >= 4, "dim must be >= 4 (dim == 2 divides by zero, as in the reference)"
    half_dim = dim // 2
    emb_factor = math.log(10000.0) / (half_dim - 1)

    # Hoisted frequency row, duplicated for the sin and cos halves.
    freqs = jnp.exp(jnp.arange(half_dim, dtype=jnp.float32) * (-emb_factor))
    freq_full = jnp.concatenate([freqs, freqs])  # (dim,)

    # Lane-packing factor: pack r embedding rows per stored row so the stored
    # minor dim W = r*dim is a multiple of 128 (full-lane unmasked stores).
    if dim % 128 == 0:
        r = 1
    else:
        r = 128 // math.gcd(dim, 128)
        if r > 16:  # pathological dims (e.g. dim=6): fall back to unpacked
            r = 1
    width = r * dim

    # Constant tables (computed once in the wrapper, constant index_map).
    freq_table = jnp.zeros((r, width), jnp.float32)
    for k in range(r):
        freq_table = freq_table.at[k, k * dim : (k + 1) * dim].set(freq_full)
    sin_mask = jnp.tile(
        (jnp.arange(dim) < half_dim).astype(jnp.float32), (r,)
    ).reshape(1, width)

    B = t.shape[0]
    t_f32 = t.astype(jnp.float32).reshape(B)

    # Row tiling: size the output block by bytes (~block_bytes), aligned to the
    # dtype's sublane granule, while keeping padding waste small.
    dsize = jnp.dtype(out_dtype).itemsize
    row_align = {4: 8, 2: 16, 1: 32}.get(dsize, 8)
    bytes_per_row = width * dsize
    tr_budget = max(row_align, (block_bytes // bytes_per_row) // row_align * row_align)

    rows = -(-B // r)                       # packed rows needed
    n_blocks = -(-rows // tr_budget)
    tr = _round_up(-(-rows // n_blocks), row_align)
    rows_pad = _round_up(rows, tr)

    total = rows_pad * r
    if total != B:
        t_f32 = jnp.pad(t_f32, (0, total - B))
    t_mat = t_f32.reshape(rows_pad, r)
    t_cols = [t_mat[:, k : k + 1] for k in range(r)]  # r tiny (rows_pad, 1) arrays

    grid = (rows_pad // tr,)
    in_specs = (
        [pl.BlockSpec((tr, 1), lambda i: (i, 0)) for _ in range(r)]
        + [
            pl.BlockSpec((r, width), lambda i: (0, 0)),   # constant freq table
            pl.BlockSpec((1, width), lambda i: (0, 0)),   # constant sin mask
        ]
    )
    out_spec = pl.BlockSpec((tr, width), lambda i: (i, 0))

    # Explicit VMEM budget: double-buffered output + t columns + tables.
    vmem_needed = (
        2 * tr * width * dsize + 2 * r * tr * 4 + 2 * (r + 1) * width * 4
    )
    vmem_limit = int(min(max(2 * vmem_needed, 16 << 20), 64 << 20))

    out_packed = pl.pallas_call(
        functools.partial(_sinusoidal_kernel, r=r),
        out_shape=jax.ShapeDtypeStruct((rows_pad, width), out_dtype),
        grid=grid,
        in_specs=in_specs,
        out_specs=out_spec,
        compiler_params=pltpu.CompilerParams(
            dimension_semantics=("parallel",),
            vmem_limit_bytes=vmem_limit,
        ),
        cost_estimate=pl.CostEstimate(
            flops=2 * r * rows_pad * width,
            transcendentals=2 * rows_pad * width,
            bytes_accessed=rows_pad * width * dsize + rows_pad * r * 4 + (r + 1) * width * 4,
        ),
    )(*t_cols, freq_table, sin_mask)

    # (rows_pad, r*dim) -> (rows_pad*r, dim) is a free row-major reshape.
    return out_packed.reshape(rows_pad * r, dim)[:B]


def _reference(t, dim):
    half_dim = dim // 2
    emb_factor = math.log(10000.0) / (half_dim - 1)
    freqs = jnp.exp(jnp.arange(half_dim, dtype=jnp.float32) * -emb_factor)
    emb = t.astype(jnp.float32)[:, None] * freqs[None, :]
    return jnp.concatenate([jnp.sin(emb), jnp.cos(emb)], axis=-1)


if __name__ == "__main__":
    key = jax.random.PRNGKey(0)
    # Small shapes consistent with a diffusion timestep embedding.
    B, DIM = 8, 32
    t = jax.random.uniform(key, (B,), dtype=jnp.float32) * 1000.0

    out = jax.block_until_ready(sinusoidal_pos_emb(t, DIM))
    ref = _reference(t, DIM)
    assert out.shape == (B, DIM)
    assert out.dtype == jnp.float32
    assert jnp.allclose(out, ref, atol=1e-5, rtol=1e-5), "mismatch vs reference"

    # Path coverage: batch padding (B % r != 0) and the dim >= 128 (r == 1) path.
    for b2, d2 in ((20, 32), (16, 256)):
        t2 = jax.random.uniform(jax.random.PRNGKey(1), (b2,), dtype=jnp.float32) * 1000.0
        o2 = jax.block_until_ready(sinusoidal_pos_emb(t2, d2))
        assert o2.shape == (b2, d2)
        assert jnp.allclose(o2, _reference(t2, d2), atol=1e-5, rtol=1e-5), "mismatch (cfg)"

    # bf16 output path (compute in f32, cast on store).
    ob = jax.block_until_ready(sinusoidal_pos_emb(t, DIM, out_dtype=jnp.bfloat16))
    assert ob.dtype == jnp.bfloat16
    assert jnp.allclose(ob.astype(jnp.float32), ref, atol=1e-2, rtol=1e-2), "bf16 mismatch"

    print("KERNEL_OK")
</pallas_src>

<mosaic_0001>
module attributes {stable_mosaic.version = 11 : i64} {
  func.func @_sinusoidal_kernel(%arg0: i32, %arg1: memref<8x1xf32, #tpu.memory_space<vmem>>, %arg2: memref<8x1xf32, #tpu.memory_space<vmem>>, %arg3: memref<8x1xf32, #tpu.memory_space<vmem>>, %arg4: memref<8x1xf32, #tpu.memory_space<vmem>>, %arg5: memref<4x128xf32, #tpu.memory_space<vmem>>, %arg6: memref<1x128xf32, #tpu.memory_space<vmem>>, %arg7: memref<8x128xf32, #tpu.memory_space<vmem>>) attributes {dimension_semantics = [#tpu.dimension_semantics<parallel>], iteration_bounds = array<i64: 1>, scalar_prefetch = 0 : i64, scratch_operands = 0 : i64, tpu.core_type = #tpu.core_type<tc>, window_params = [{transform_indices = @transform_0, window_bounds = array<i64: 8, 1>}, {transform_indices = @transform_1, window_bounds = array<i64: 8, 1>}, {transform_indices = @transform_2, window_bounds = array<i64: 8, 1>}, {transform_indices = @transform_3, window_bounds = array<i64: 8, 1>}, {pipeline_mode = #tpu.pipeline_mode<synchronous>, transform_indices = @transform_4, window_bounds = array<i64: 4, 128>}, {pipeline_mode = #tpu.pipeline_mode<synchronous>, transform_indices = @transform_5, window_bounds = array<i64: 1, 128>}, {transform_indices = @transform_6, window_bounds = array<i64: 8, 128>}]} {
    %c0 = arith.constant 0 : index
    %c0_0 = arith.constant 0 : index
    %0 = vector.load %arg1[%c0, %c0_0] : memref<8x1xf32, #tpu.memory_space<vmem>>, vector<8x1xf32>
    %c0_1 = arith.constant 0 : index
    %c0_2 = arith.constant 0 : index
    %1 = vector.load %arg5[%c0_1, %c0_2] : memref<4x128xf32, #tpu.memory_space<vmem>>, vector<1x128xf32>
    %2 = vector.broadcast %0 : vector<8x1xf32> to vector<8x128xf32>
    %3 = vector.broadcast %1 : vector<1x128xf32> to vector<8x128xf32>
    %4 = arith.mulf %2, %3 : vector<8x128xf32>
    %c0_3 = arith.constant 0 : index
    %c0_4 = arith.constant 0 : index
    %5 = vector.load %arg2[%c0_3, %c0_4] : memref<8x1xf32, #tpu.memory_space<vmem>>, vector<8x1xf32>
    %c1 = arith.constant 1 : index
    %c0_5 = arith.constant 0 : index
    %6 = vector.load %arg5[%c1, %c0_5] : memref<4x128xf32, #tpu.memory_space<vmem>>, vector<1x128xf32>
    %7 = vector.broadcast %5 : vector<8x1xf32> to vector<8x128xf32>
    %8 = vector.broadcast %6 : vector<1x128xf32> to vector<8x128xf32>
    %9 = arith.mulf %7, %8 : vector<8x128xf32>
    %10 = arith.addf %4, %9 : vector<8x128xf32>
    %c0_6 = arith.constant 0 : index
    %c0_7 = arith.constant 0 : index
    %11 = vector.load %arg3[%c0_6, %c0_7] : memref<8x1xf32, #tpu.memory_space<vmem>>, vector<8x1xf32>
    %c2 = arith.constant 2 : index
    %c0_8 = arith.constant 0 : index
    %12 = vector.load %arg5[%c2, %c0_8] : memref<4x128xf32, #tpu.memory_space<vmem>>, vector<1x128xf32>
    %13 = vector.broadcast %11 : vector<8x1xf32> to vector<8x128xf32>
    %14 = vector.broadcast %12 : vector<1x128xf32> to vector<8x128xf32>
    %15 = arith.mulf %13, %14 : vector<8x128xf32>
    %16 = arith.addf %10, %15 : vector<8x128xf32>
    %c0_9 = arith.constant 0 : index
    %c0_10 = arith.constant 0 : index
    %17 = vector.load %arg4[%c0_9, %c0_10] : memref<8x1xf32, #tpu.memory_space<vmem>>, vector<8x1xf32>
    %c3 = arith.constant 3 : index
    %c0_11 = arith.constant 0 : index
    %18 = vector.load %arg5[%c3, %c0_11] : memref<4x128xf32, #tpu.memory_space<vmem>>, vector<1x128xf32>
    %19 = vector.broadcast %17 : vector<8x1xf32> to vector<8x128xf32>
    %20 = vector.broadcast %18 : vector<1x128xf32> to vector<8x128xf32>
    %21 = arith.mulf %19, %20 : vector<8x128xf32>
    %22 = arith.addf %16, %21 : vector<8x128xf32>
    %c0_12 = arith.constant 0 : index
    %c0_13 = arith.constant 0 : index
    %23 = vector.load %arg6[%c0_12, %c0_13] : memref<1x128xf32, #tpu.memory_space<vmem>>, vector<1x128xf32>
    %cst = arith.constant 0.000000e+00 : f32
    %24 = vector.broadcast %cst : f32 to vector<1x128xf32>
    %25 = arith.cmpf one, %23, %24 : vector<1x128xf32>
    %26 = math.sin %22 : vector<8x128xf32>
    %27 = math.cos %22 : vector<8x128xf32>
    %28 = vector.shape_cast %25 : vector<1x128xi1> to vector<1x128xi1>
    %29 = vector.broadcast %28 : vector<1x128xi1> to vector<8x128xi1>
    %30 = arith.select %29, %26, %27 : vector<8x128xi1>, vector<8x128xf32>
    %c0_14 = arith.constant 0 : index
    %c0_15 = arith.constant 0 : index
    %31 = vector.load %arg7[%c0_14, %c0_15] : memref<8x128xf32, #tpu.memory_space<vmem>>, vector<8x128xf32>
    tpu.vector_store %arg7[%c0_14, %c0_15], %30 {strides = array<i32>} : memref<8x128xf32, #tpu.memory_space<vmem>>, vector<8x128xf32>,
    return
  }
  func.func @transform_0(%arg0: i32) -> (i32, i32) {
    %c0_i32 = arith.constant 0 : i32
    %c0_i32_0 = arith.constant 0 : i32
    return %arg0, %c0_i32 : i32, i32
  }
  func.func @transform_1(%arg0: i32) -> (i32, i32) {
    %c0_i32 = arith.constant 0 : i32
    %c0_i32_0 = arith.constant 0 : i32
    return %arg0, %c0_i32 : i32, i32
  }
  func.func @transform_2(%arg0: i32) -> (i32, i32) {
    %c0_i32 = arith.constant 0 : i32
    %c0_i32_0 = arith.constant 0 : i32
    return %arg0, %c0_i32 : i32, i32
  }
  func.func @transform_3(%arg0: i32) -> (i32, i32) {
    %c0_i32 = arith.constant 0 : i32
    %c0_i32_0 = arith.constant 0 : i32
    return %arg0, %c0_i32 : i32, i32
  }
  func.func @transform_4(%arg0: i32) -> (i32, i32) {
    %c0_i32 = arith.constant 0 : i32
    %c0_i32_0 = arith.constant 0 : i32
    %c0_i32_1 = arith.constant 0 : i32
    return %c0_i32, %c0_i32_0 : i32, i32
  }
  func.func @transform_5(%arg0: i32) -> (i32, i32) {
    %c0_i32 = arith.constant 0 : i32
    %c0_i32_0 = arith.constant 0 : i32
    %c0_i32_1 = arith.constant 0 : i32
    return %c0_i32, %c0_i32_0 : i32, i32
  }
  func.func @transform_6(%arg0: i32) -> (i32, i32) {
    %c0_i32 = arith.constant 0 : i32
    %c0_i32_0 = arith.constant 0 : i32
    return %arg0, %c0_i32 : i32, i32
  }
}

</mosaic_0001>

<llo_original>
// kernel: tpu_custom_call.1
$region0: #{tpu_custom_call.1}
  #allocation0 [shape = 'u32[]', space=smem, size = 0x4, offset = 0x4, fixed_abs, tag = 'smem constant byte address 0x4 - core index']
  #allocation1 [shape = 'u32[72,128]{1,0:T(1,128)}', space=vmem, size = 0x9000, scoped, tag = 'internal scratch']
  %s0 = inlined_call_operand.vmem [shape: f32[8,1], index: 0, kind: input, shape index: {}]
  %s1 = inlined_call_operand.vmem [shape: f32[8,1], index: 1, kind: input, shape index: {}]
  %s2 = inlined_call_operand.vmem [shape: f32[8,1], index: 2, kind: input, shape index: {}]
  %s3 = inlined_call_operand.vmem [shape: f32[8,1], index: 3, kind: input, shape index: {}]
  %s4 = inlined_call_operand.vmem [shape: f32[4,128], index: 4, kind: input, shape index: {}]
  %s5 = inlined_call_operand.vmem [shape: f32[1,128], index: 5, kind: input, shape index: {}]
  %s6 = inlined_call_operand.hbm [shape: f32[8,128], index: 6, kind: output, shape index: {}]
  %s7 = sld [smem:[#allocation0]]
  $region34: #{tpu_custom_call.1} parent=0
    _
  %s9 = ssub.s32 1, %s7
  %s10 = scalar_select 0, %s9, %s7
  $region1: #{tpu_custom_call.1} parent=0
    #allocation2 [shape = 'u8[4096]{0}', space=vmem, size = 0x1000, scoped, tag = 'output window, operand 0, single buffered']
    #allocation3 [shape = 's32[1]{0}', space=sflag, size = 0x4, scoped, tag = 'scoped memory for tpu_custom_call.1']
    %11 = vsyncpa [#allocation3], 0
    // Predicated region
    $region2: #{tpu_custom_call.1} parent=1 // pred_check
      _
    $region3: #{tpu_custom_call.1} parent=1 // pred_check_branch
      %13 = sbr.rel (0) target = $region5
    $region4: #{tpu_custom_call.1} parent=1 // pred_region
      _
    $region5: #{tpu_custom_call.1} parent=1 // pred_fallthru
      _
    // Predicated region
    $region6: #{tpu_custom_call.1} parent=1 // pred_check
      _
    $region7: #{tpu_custom_call.1} parent=1 // pred_check_branch
      %15 = sbr.rel (0) target = $region9
    $region8: #{tpu_custom_call.1} parent=1 // pred_region
      _
    $region9: #{tpu_custom_call.1} parent=1 // pred_fallthru
      _
    // Predicated region
    $region10: #{tpu_custom_call.1} parent=1 // pred_check
      _
    $region11: #{tpu_custom_call.1} parent=1 // pred_check_branch
      %17 = sbr.rel (0) target = $region13
    $region12: #{tpu_custom_call.1} parent=1 // pred_region
      _
    $region13: #{tpu_custom_call.1} parent=1 // pred_fallthru
      _
    // Predicated region
    $region14: #{tpu_custom_call.1} parent=1 // pred_check
      _
    $region15: #{tpu_custom_call.1} parent=1 // pred_check_branch
      %19 = sbr.rel (0) target = $region17
    $region16: #{tpu_custom_call.1} parent=1 // pred_region
      _
    $region17: #{tpu_custom_call.1} parent=1 // pred_fallthru
      _
    // Predicated region
    $region18: #{tpu_custom_call.1} parent=1 // pred_check
      _
    $region19: #{tpu_custom_call.1} parent=1 // pred_check_branch
      %21 = sbr.rel (0) target = $region21
    $region20: #{tpu_custom_call.1} parent=1 // pred_region
      _
    $region21: #{tpu_custom_call.1} parent=1 // pred_fallthru
      _
    // Predicated region
    $region22: #{tpu_custom_call.1} parent=1 // pred_check
      _
    $region23: #{tpu_custom_call.1} parent=1 // pred_check_branch
      %23 = sbr.rel (0) target = $region25
    $region24: #{tpu_custom_call.1} parent=1 // pred_region
      _
    $region25: #{tpu_custom_call.1} parent=1 // pred_fallthru
      _
    %v24 = vld [vmem:[%s0] sm:$0xff]
    %v25 = vld [vmem:[%s4] sm:$0x1]
    %27 = vset.pattern.permute.xlu0 0
    %28 = vperm.xlu0 %27, %v24
    %v29 = vpop.permute.xlu0 %28
    %v31 = vperm.slane %v25, 0
    %v32 = vmul.f32 %v29, %v31
    %v33 = vld [vmem:[%s1] sm:$0xff]
    %v34 = vld [vmem:[%s4 + $0x1] sm:$0x1]
    %36 = vset.pattern.permute.xlu0 0
    %37 = vperm.xlu0 %36, %v33
    %v38 = vpop.permute.xlu0 %37
    %v40 = vperm.slane %v34, 0
    %v41 = vmul.f32 %v38, %v40
    %v42 = vadd.f32 %v32, %v41
    %v43 = vld [vmem:[%s2] sm:$0xff]
    %v44 = vld [vmem:[%s4 + $0x2] sm:$0x1]
    %46 = vset.pattern.permute.xlu0 0
    %47 = vperm.xlu0 %46, %v43
    %v48 = vpop.permute.xlu0 %47
    %v50 = vperm.slane %v44, 0
    %v51 = vmul.f32 %v48, %v50
    %v52 = vadd.f32 %v42, %v51
    %v53 = vld [vmem:[%s3] sm:$0xff]
    %v54 = vld [vmem:[%s4 + $0x3] sm:$0x1]
    %56 = vset.pattern.permute.xlu0 0
    %57 = vperm.xlu0 %56, %v53
    %v58 = vpop.permute.xlu0 %57
    %v60 = vperm.slane %v54, 0
    %v61 = vmul.f32 %v58, %v60
    %v62 = vadd.f32 %v52, %v61
    %v63 = vld [vmem:[%s5] sm:$0x1]
    %vm64 = vcmp.ne.f32.partialorder %v63, 0.0
    %v65 = vand.u32 2147483647, %v62
    %vm66 = vcmp.le.f32.partialorder %v65, 0.7853982
    %vm67 = vcmp.lt.s32.totalorder %v62, 0
    %v68 = vand.u32 %v62, 2139095040
    %v69 = vshrl.u32 %v68, 23
    %v70 = vsub.s32 %v69, 127
    %v71 = vand.u32 2147483647, %v62
    %v72 = vand.u32 %v71, 8388607
    %v73 = vor.u32 %v72, 8388608
    %v74 = vsub.s32 0, %v73
    %v75 = vadd.s32 %v70, 1
    %vm76 = vcmp.gt.s32.totalorder %v75, 0
    %v77 = vsel %vm76, %v75, 0
    %v78 = vshrl.u32 %v77, 5
    %v79 = vand.u32 %v77, 31
    %v80 = vsub.s32 32, %v79
    %v81 = vshrl.u32 683565275, %v80
    %v82 = vshll.u32 683565275, %v79
    %v83 = vshrl.u32 2475754826, %v80
    %v84 = vor.u32 %v82, %v83
    %v85 = vshll.u32 2475754826, %v79
    %v86 = vshrl.u32 2131351028, %v80
    %v87 = vor.u32 %v85, %v86
    %v88 = vshll.u32 2131351028, %v79
    %v89 = vshrl.u32 2102212464, %v80
    %v90 = vor.u32 %v88, %v89
    %v91 = vshll.u32 2102212464, %v79
    %v92 = vshrl.u32 920167782, %v80
    %v93 = vor.u32 %v91, %v92
    %v94 = vshll.u32 920167782, %v79
    %v95 = vshrl.u32 1326507024, %v80
    %v96 = vor.u32 %v94, %v95
    %vm97 = vcmp.lt.s32.totalorder %v78, 1
    %vm98 = vcmp.lt.s32.totalorder %v78, 2
    %vm99 = vcmp.lt.s32.totalorder %v78, 3
    %vm100 = vcmp.lt.s32.totalorder %v78, 4
    %v101 = vsel %vm97, %v81, %v84
    %v102 = vsel %vm100, %v90, 2102212464
    %v103 = vsel %vm99, %v87, %v102
    %v104 = vsel %vm98, %v101, %v103
    %v105 = vsel %vm97, %v84, %v87
    %v106 = vsel %vm100, %v93, 920167782
    %v107 = vsel %vm99, %v90, %v106
    %v108 = vsel %vm98, %v105, %v107
    %v109 = vsel %vm97, %v87, %v90
    %v110 = vsel %vm100, %v96, 1326507024
    %v111 = vsel %vm99, %v93, %v110
    %v112 = vsel %vm98, %v109, %v111
    %v113 = vshll.u32 %v73, 8
    %v114 = vand.u32 %v113, 65535
    %v115 = vshrl.u32 %v113, 16
    %v116 = vand.u32 %v112, 65535
    %v117 = vshrl.u32 %v112, 16
    %v118 = vmul.u32 %v114, %v116
    %v119 = vmul.u32 %v114, %v117
    %v120 = vmul.u32 %v115, %v116
    %v121 = vmul.u32 %v115, %v117
    %v122 = vshll.u32 %v119, 16
    %v123 = vshrl.u32 %v119, 16
    %v124 = vshll.u32 %v120, 16
    %v125 = vshrl.u32 %v120, 16
    %vm126 = vc.u32 %v118, %v122
    %v127 = vsel %vm126, 1, 0
    %v128 = vadd.s32 %v118, %v122
    %v129 = vadd.s32 %v121, %v127
    %vm130 = vc.u32 %v128, %v124
    %v131 = vsel %vm130, 1, 0
    %v132 = vadd.s32 %v128, %v124
    %v133 = vadd.s32 %v129, %v131
    %v134 = vadd.s32 %v133, %v123
    %v135 = vadd.s32 %v134, %v125
    %v136 = vand.u32 %v113, 65535
    %v137 = vshrl.u32 %v113, 16
    %v138 = vand.u32 %v108, 65535
    %v139 = vshrl.u32 %v108, 16
    %v140 = vmul.u32 %v136, %v138
    %v141 = vmul.u32 %v136, %v139
    %v142 = vmul.u32 %v137, %v138
    %v143 = vmul.u32 %v137, %v139
    %v144 = vshll.u32 %v141, 16
    %v145 = vshrl.u32 %v141, 16
    %v146 = vshll.u32 %v142, 16
    %v147 = vshrl.u32 %v142, 16
    %vm148 = vc.u32 %v140, %v144
    %v149 = vsel %vm148, 1, 0
    %v150 = vadd.s32 %v140, %v144
    %v151 = vadd.s32 %v143, %v149
    %vm152 = vc.u32 %v150, %v146
    %v153 = vsel %vm152, 1, 0
    %v154 = vadd.s32 %v150, %v146
    %v155 = vadd.s32 %v151, %v153
    %v156 = vadd.s32 %v155, %v145
    %v157 = vadd.s32 %v156, %v147
    %v158 = vmul.u32 %v113, %v104
    %v159 = vadd.s32 %v135, %v154
    %vm160 = vc.u32 %v135, %v154
    %v161 = vadd.s32 %v157, 1
    %v162 = vsel %vm160, %v161, %v157
    %v163 = vadd.s32 %v158, %v162
    %v164 = vadd.s32 %v163, 536870912
    %v165 = vshrl.u32 %v164, 30
    %v166 = vshll.u32 %v165, 30
    %v167 = vsub.s32 %v163, %v166
    %vm168 = vcmp.lt.s32.totalorder %v167, 0
    %v169 = vsub.s32 0, %v167
    %v170 = vsel %vm168, %v169, %v167
    %v171 = vclz %v170
    %v172 = vsub.s32 %v171, 2
    %vm173 = vcmp.gt.s32.totalorder 0, %v172
    %v174 = vsel %vm173, 0, %v172
    %v175 = vsub.s32 32, %v174
    %v176 = vshll.u32 %v167, %v174
    %v177 = vshrl.u32 %v159, %v175
    %v178 = vor.u32 %v176, %v177
    %v179 = vsub.s32 4294967266, %v174
    %v180 = vadd.s32 %v179, 127
    %v181 = vshll.u32 %v180, 23
    %v182 = vor.u32 4788187, %v181
    %v183 = vand.u32 2147483647, %v182
    %v185 = vcvt.s32.f32 %v178
    %v186 = vmul.f32 %v185, %v183
    %v187 = vxor.u32 %v186, 2147483648
    %v188 = vsel %vm67, %v187, %v186
    %v189 = vsub.s32 4, %v165
    %v190 = vsel %vm67, %v189, %v165
    %v191 = vsel %vm66, %v62, %v188
    %v192 = vsel %vm66, 0, %v190
    %v193 = vmul.f32 %v191, %v191
    %v194 = vmul.f32 %v193, -0.001358992
    %v195 = vadd.f32 %v194, 0.041655596
    %v196 = vmul.f32 %v193, %v195
    %v197 = vadd.f32 %v196, -0.4999988
    %v198 = vmul.f32 %v193, %v197
    %v199 = vadd.f32 1.0, %v198
    %v200 = vmul.f32 %v191, %v191
    %v201 = vmul.f32 %v200, -0.00019511016
    %v202 = vadd.f32 %v201, 0.008332121
    %v203 = vmul.f32 %v200, %v202
    %v204 = vadd.f32 %v203, -0.16666654
    %v205 = vmul.f32 %v200, %v204
    %v206 = vadd.f32 %v205, 1.0
    %v207 = vmul.f32 %v206, %v191
    %vm208 = vweird.f32 %v62
    %v209 = vadd.s32 %v192, 3
    %v210 = vand.u32 %v209, 3
    %vm211 = vcmp.lt.s32.totalorder %v210, 2
    %vm212 = vcmp.eq.s32.totalorder %v210, 0
    %v213 = vxor.u32 %v207, 2147483648
    %v214 = vsel %vm212, %v199, %v213
    %vm215 = vcmp.eq.s32.totalorder %v210, 2
    %v216 = vxor.u32 %v199, 2147483648
    %v217 = vsel %vm215, %v216, %v207
    %v218 = vsel %vm211, %v214, %v217
    %v219 = vsel %vm208, nan, %v218
    %v220 = vand.u32 2147483647, %v62
    %vm221 = vcmp.le.f32.partialorder %v220, 0.7853982
    %vm222 = vcmp.lt.s32.totalorder %v62, 0
    %v223 = vand.u32 %v62, 2139095040
    %v224 = vshrl.u32 %v223, 23
    %v225 = vsub.s32 %v224, 127
    %v226 = vand.u32 2147483647, %v62
    %v227 = vand.u32 %v226, 8388607
    %v228 = vor.u32 %v227, 8388608
    %v229 = vsub.s32 0, %v228
    %v230 = vadd.s32 %v225, 1
    %vm231 = vcmp.gt.s32.totalorder %v230, 0
    %v232 = vsel %vm231, %v230, 0
    %v233 = vshrl.u32 %v232, 5
    %v234 = vand.u32 %v232, 31
    %v235 = vsub.s32 32, %v234
    %v236 = vshrl.u32 683565275, %v235
    %v237 = vshll.u32 683565275, %v234
    %v238 = vshrl.u32 2475754826, %v235
    %v239 = vor.u32 %v237, %v238
    %v240 = vshll.u32 2475754826, %v234
    %v241 = vshrl.u32 2131351028, %v235
    %v242 = vor.u32 %v240, %v241
    %v243 = vshll.u32 2131351028, %v234
    %v244 = vshrl.u32 2102212464, %v235
    %v245 = vor.u32 %v243, %v244
    %v246 = vshll.u32 2102212464, %v234
    %v247 = vshrl.u32 920167782, %v235
    %v248 = vor.u32 %v246, %v247
    %v249 = vshll.u32 920167782, %v234
    %v250 = vshrl.u32 1326507024, %v235
    %v251 = vor.u32 %v249, %v250
    %vm252 = vcmp.lt.s32.totalorder %v233, 1
    %vm253 = vcmp.lt.s32.totalorder %v233, 2
    %vm254 = vcmp.lt.s32.totalorder %v233, 3
    %vm255 = vcmp.lt.s32.totalorder %v233, 4
    %v256 = vsel %vm252, %v236, %v239
    %v257 = vsel %vm255, %v245, 2102212464
    %v258 = vsel %vm254, %v242, %v257
    %v259 = vsel %vm253, %v256, %v258
    %v260 = vsel %vm252, %v239, %v242
    %v261 = vsel %vm255, %v248, 920167782
    %v262 = vsel %vm254, %v245, %v261
    %v263 = vsel %vm253, %v260, %v262
    %v264 = vsel %vm252, %v242, %v245
    %v265 = vsel %vm255, %v251, 1326507024
    %v266 = vsel %vm254, %v248, %v265
    %v267 = vsel %vm253, %v264, %v266
    %v268 = vshll.u32 %v228, 8
    %v269 = vand.u32 %v268, 65535
    %v270 = vshrl.u32 %v268, 16
    %v271 = vand.u32 %v267, 65535
    %v272 = vshrl.u32 %v267, 16
    %v273 = vmul.u32 %v269, %v271
    %v274 = vmul.u32 %v269, %v272
    %v275 = vmul.u32 %v270, %v271
    %v276 = vmul.u32 %v270, %v272
    %v277 = vshll.u32 %v274, 16
    %v278 = vshrl.u32 %v274, 16
    %v279 = vshll.u32 %v275, 16
    %v280 = vshrl.u32 %v275, 16
    %vm281 = vc.u32 %v273, %v277
    %v282 = vsel %vm281, 1, 0
    %v283 = vadd.s32 %v273, %v277
    %v284 = vadd.s32 %v276, %v282
    %vm285 = vc.u32 %v283, %v279
    %v286 = vsel %vm285, 1, 0
    %v287 = vadd.s32 %v283, %v279
    %v288 = vadd.s32 %v284, %v286
    %v289 = vadd.s32 %v288, %v278
    %v290 = vadd.s32 %v289, %v280
    %v291 = vand.u32 %v268, 65535
    %v292 = vshrl.u32 %v268, 16
    %v293 = vand.u32 %v263, 65535
    %v294 = vshrl.u32 %v263, 16
    %v295 = vmul.u32 %v291, %v293
    %v296 = vmul.u32 %v291, %v294
    %v297 = vmul.u32 %v292, %v293
    %v298 = vmul.u32 %v292, %v294
    %v299 = vshll.u32 %v296, 16
    %v300 = vshrl.u32 %v296, 16
    %v301 = vshll.u32 %v297, 16
    %v302 = vshrl.u32 %v297, 16
    %vm303 = vc.u32 %v295, %v299
    %v304 = vsel %vm303, 1, 0
    %v305 = vadd.s32 %v295, %v299
    %v306 = vadd.s32 %v298, %v304
    %vm307 = vc.u32 %v305, %v301
    %v308 = vsel %vm307, 1, 0
    %v309 = vadd.s32 %v305, %v301
    %v310 = vadd.s32 %v306, %v308
    %v311 = vadd.s32 %v310, %v300
    %v312 = vadd.s32 %v311, %v302
    %v313 = vmul.u32 %v268, %v259
    %v314 = vadd.s32 %v290, %v309
    %vm315 = vc.u32 %v290, %v309
    %v316 = vadd.s32 %v312, 1
    %v317 = vsel %vm315, %v316, %v312
    %v318 = vadd.s32 %v313, %v317
    %v319 = vadd.s32 %v318, 536870912
    %v320 = vshrl.u32 %v319, 30
    %v321 = vshll.u32 %v320, 30
    %v322 = vsub.s32 %v318, %v321
    %vm323 = vcmp.lt.s32.totalorder %v322, 0
    %v324 = vsub.s32 0, %v322
    %v325 = vsel %vm323, %v324, %v322
    %v326 = vclz %v325
    %v327 = vsub.s32 %v326, 2
    %vm328 = vcmp.gt.s32.totalorder 0, %v327
    %v329 = vsel %vm328, 0, %v327
    %v330 = vsub.s32 32, %v329
    %v331 = vshll.u32 %v322, %v329
    %v332 = vshrl.u32 %v314, %v330
    %v333 = vor.u32 %v331, %v332
    %v334 = vsub.s32 4294967266, %v329
    %v335 = vadd.s32 %v334, 127
    %v336 = vshll.u32 %v335, 23
    %v337 = vor.u32 4788187, %v336
    %v338 = vand.u32 2147483647, %v337
    %v340 = vcvt.s32.f32 %v333
    %v341 = vmul.f32 %v340, %v338
    %v342 = vxor.u32 %v341, 2147483648
    %v343 = vsel %vm222, %v342, %v341
    %v344 = vsub.s32 4, %v320
    %v345 = vsel %vm222, %v344, %v320
    %v346 = vsel %vm221, %v62, %v343
    %v347 = vsel %vm221, 0, %v345
    %v348 = vmul.f32 %v346, %v346
    %v349 = vmul.f32 %v348, -0.001358992
    %v350 = vadd.f32 %v349, 0.041655596
    %v351 = vmul.f32 %v348, %v350
    %v352 = vadd.f32 %v351, -0.4999988
    %v353 = vmul.f32 %v348, %v352
    %v354 = vadd.f32 1.0, %v353
    %v355 = vmul.f32 %v346, %v346
    %v356 = vmul.f32 %v355, -0.00019511016
    %v357 = vadd.f32 %v356, 0.008332121
    %v358 = vmul.f32 %v355, %v357
    %v359 = vadd.f32 %v358, -0.16666654
    %v360 = vmul.f32 %v355, %v359
    %v361 = vadd.f32 %v360, 1.0
    %v362 = vmul.f32 %v361, %v346
    %vm363 = vweird.f32 %v62
    %v364 = vand.u32 %v347, 3
    %vm365 = vcmp.lt.s32.totalorder %v364, 2
    %vm366 = vcmp.eq.s32.totalorder %v364, 0
    %v367 = vxor.u32 %v362, 2147483648
    %v368 = vsel %vm366, %v354, %v367
    %vm369 = vcmp.eq.s32.totalorder %v364, 2
    %v370 = vxor.u32 %v354, 2147483648
    %v371 = vsel %vm369, %v370, %v362
    %v372 = vsel %vm365, %v368, %v371
    %v373 = vsel %vm363, nan, %v372
    %v374 = vsel %vm64, 1, 0
    %v375 = vperm.slane %v374, 0
    %vm376 = vcmp.eq.s32.totalorder %v375, 1
    %v377 = vsel %vm376, %v219, %v373
    %378 = vst [vmem:[#allocation2] sm:$0xff] %v377
    // Predicated region
    $region26: #{tpu_custom_call.1} parent=1 // pred_check
      _
    $region27: #{tpu_custom_call.1} parent=1 // pred_check_branch
      %380 = sbr.rel (0) target = $region29
    $region28: #{tpu_custom_call.1} parent=1 // pred_region
      %382 = vsyncadd [#allocation3], 0
      %s384 = sshll.u32 [#allocation2], 4
      %s385 = int_to_ptr.vmem [resolvable:$true] %s384
      %s386 = sshll.u32 %s6, 4
      %s387 = int_to_ptr.hbm [resolvable:$true] %s386
      %389 = dma.vmem_to_hbm [thread:$0]  %s385, 128, %s387, [#allocation3]
    $region29: #{tpu_custom_call.1} parent=1 // pred_fallthru
      _
    // Predicated region
    $region30: #{tpu_custom_call.1} parent=1 // pred_check
      _
    $region31: #{tpu_custom_call.1} parent=1 // pred_check_branch
      %391 = sbr.rel (0) target = $region33
    $region32: #{tpu_custom_call.1} parent=1 // pred_region
      %393 = dma.done [#allocation3], 128
    $region33: #{tpu_custom_call.1} parent=1 // pred_fallthru
      _
    %394 = vsyncpa [#allocation3], 1

</llo_original>
